<compile_context>
chip_gen: v6e
topology: v6e:2x2x1
jax: 0.10.0
libtpu: 0.0.40
codegen_flags: <defaults>
</compile_context>

<pallas_src>
import jax
import jax.numpy as jnp
from jax.experimental import pallas as pl
from jax.experimental.pallas import tpu as pltpu


def _patch_merging_kernel(x_ref, w_ref, b_ref, alpha_ref, o_ref):
    """One (batch, token-tile) grid step.

    x_ref     : (1, 4C, TN)  merged input tile (channels on sublanes, tokens on lanes)
    w_ref     : (2C, 4C)     1x1 conv weight
    b_ref     : (2C, 1)      conv bias (per output channel)
    alpha_ref : (1, 1) SMEM  PReLU slope
    o_ref     : (1, 2C, TN)  output tile (lane-dense along tokens)
    """
    # Single MXU push: K = 4C, N = TN.
    y = jnp.dot(w_ref[...], x_ref[0], preferred_element_type=jnp.float32)
    y = y + b_ref[...]                      # (2C,1) lane-broadcast bias
    alpha = alpha_ref[0, 0]                 # scalar from SMEM
    y = jnp.where(y > 0, y, alpha * y)      # PReLU
    o_ref[0] = y.astype(o_ref.dtype)


@jax.jit
def patch_merging_forward(x, conv_w, conv_b, prelu_alpha):
    """x: (B, C, H, W) f32; conv_w: (2C, 4C, 1, 1); conv_b: (2C,); prelu_alpha scalar.

    Returns (B, 2C, H//2, W//2) f32, matching PatchMerging.forward (eval).
    """
    B, C, H, W = x.shape
    assert H % 2 == 0 and W % 2 == 0, "PatchMerging requires even H and W"
    Hh, Wh = H // 2, W // 2
    C4, C2 = 4 * C, 2 * C

    # --- Patch-merge reshuffle: exact mirror of the PyTorch slice/cat/view. ---
    # Pure data movement (gather); done in plain JAX since it is not a
    # rectangular-tile access pattern.  Result is already channel-major, so no
    # extra transpose pass is needed for the kernel.
    x0 = x[:, :, 0::2, 0::2]
    x1 = x[:, :, 1::2, 0::2]
    x2 = x[:, :, 0::2, 1::2]
    x3 = x[:, :, 1::2, 1::2]
    xc = jnp.concatenate([x0, x1, x2, x3], axis=-1)   # (B, C, Hh, 2W), contiguous
    xm = xc.reshape(B, C4, Hh * Wh)                   # == torch .view(B,4C,Hh,Wh), flattened

    # --- Token tiling: lane-dense (multiple of 128) when possible. ---
    ntok = Hh * Wh
    tn = None
    for cand in (512, 384, 256, 128):
        if ntok % cand == 0:
            tn = cand
            break
    if tn is None:
        tn = ntok if ntok <= 1024 else 256
    ntok_pad = -(-ntok // tn) * tn
    if ntok_pad != ntok:
        xm = jnp.pad(xm, ((0, 0), (0, 0), (0, ntok_pad - ntok)))

    w2d = conv_w.reshape(C2, C4)
    b2d = conv_b.reshape(C2, 1)
    a2d = jnp.asarray(prelu_alpha, jnp.float32).reshape(1, 1)

    out_flat = pl.pallas_call(
        _patch_merging_kernel,
        out_shape=jax.ShapeDtypeStruct((B, C2, ntok_pad), jnp.float32),
        grid_spec=pltpu.PrefetchScalarGridSpec(
            num_scalar_prefetch=0,
            grid=(B, ntok_pad // tn),
            in_specs=[
                pl.BlockSpec((1, C4, tn), lambda b, t: (b, 0, t)),
                pl.BlockSpec((C2, C4), lambda b, t: (0, 0)),
                pl.BlockSpec((C2, 1), lambda b, t: (0, 0)),
                pl.BlockSpec(memory_space=pltpu.MemorySpace.SMEM),
            ],
            out_specs=pl.BlockSpec((1, C2, tn), lambda b, t: (b, 0, t)),
        ),
        compiler_params=pltpu.CompilerParams(
            dimension_semantics=("parallel", "parallel")),
    )(xm, w2d, b2d, a2d)

    out = out_flat[:, :, :ntok].reshape(B, C2, Hh, Wh)
    return out


def _reference_forward(x, conv_w, conv_b, prelu_alpha):
    """Plain-JAX reference mirroring the PyTorch module (eval mode)."""
    B, C, H, W = x.shape
    x0 = x[:, :, 0::2, 0::2]
    x1 = x[:, :, 1::2, 0::2]
    x2 = x[:, :, 0::2, 1::2]
    x3 = x[:, :, 1::2, 1::2]
    xc = jnp.concatenate([x0, x1, x2, x3], axis=-1)
    xm = xc.reshape(B, 4 * C, H // 2, W // 2)
    w2d = conv_w.reshape(conv_w.shape[0], conv_w.shape[1])
    y = jnp.einsum("oi,bihw->bohw", w2d, xm) + conv_b.reshape(1, -1, 1, 1)
    y = jnp.where(y > 0, y, prelu_alpha * y)
    return y


if __name__ == "__main__":
    # Small shapes consistent with PatchMerging: dim=4 -> 4*dim=16 in, 2*dim=8 out.
    B, dim, H, W = 2, 4, 16, 16

    key = jax.random.PRNGKey(0)
    k1, k2, k3 = jax.random.split(key, 3)

    x = jax.random.normal(k1, (B, dim, H, W), jnp.float32)
    # Conv2d(4*dim, 2*dim, 1, 1) weight (OIHW) + bias.
    conv_w = jax.random.normal(k2, (2 * dim, 4 * dim, 1, 1), jnp.float32) * 0.1
    conv_b = 0.1 * jax.random.normal(k3, (2 * dim,), jnp.float32)
    # nn.PReLU() default: single slope, init 0.25.
    prelu_alpha = jnp.float32(0.25)

    out = patch_merging_forward(x, conv_w, conv_b, prelu_alpha)
    out = jax.block_until_ready(out)

    ref = _reference_forward(x, conv_w, conv_b, prelu_alpha)
    assert out.shape == (B, 2 * dim, H // 2, W // 2)
    assert jnp.allclose(out, ref, atol=1e-4, rtol=1e-4), "mismatch vs reference"

    print("KERNEL_OK")
</pallas_src>

<mosaic_0001>
module attributes {stable_mosaic.version = 11 : i64} {
  func.func @_patch_merging_kernel(%arg0: i32, %arg1: i32, %arg2: memref<1x16x64xf32, #tpu.memory_space<vmem>>, %arg3: memref<8x16xf32, #tpu.memory_space<vmem>>, %arg4: memref<8x1xf32, #tpu.memory_space<vmem>>, %arg5: memref<1x1xf32, #tpu.memory_space<smem>>, %arg6: memref<1x8x64xf32, #tpu.memory_space<vmem>>) attributes {dimension_semantics = [#tpu.dimension_semantics<parallel>, #tpu.dimension_semantics<parallel>], iteration_bounds = array<i64: 2, 1>, scalar_prefetch = 0 : i64, scratch_operands = 0 : i64, tpu.core_type = #tpu.core_type<tc>, window_params = [{transform_indices = @transform_0, window_bounds = array<i64: 1, 16, 64>}, {pipeline_mode = #tpu.pipeline_mode<synchronous>, transform_indices = @transform_1, window_bounds = array<i64: 8, 16>}, {pipeline_mode = #tpu.pipeline_mode<synchronous>, transform_indices = @transform_2, window_bounds = array<i64: 8, 1>}, {transform_indices = @transform_3, window_bounds = array<i64: 1, 1>}, {transform_indices = @transform_4, window_bounds = array<i64: 1, 8, 64>}]} {
    %c0 = arith.constant 0 : index
    %c0_0 = arith.constant 0 : index
    %0 = vector.load %arg3[%c0, %c0_0] : memref<8x16xf32, #tpu.memory_space<vmem>>, vector<8x16xf32>
    %c0_1 = arith.constant 0 : index
    %c0_2 = arith.constant 0 : index
    %c0_3 = arith.constant 0 : index
    %1 = vector.load %arg2[%c0_1, %c0_2, %c0_3] : memref<1x16x64xf32, #tpu.memory_space<vmem>>, vector<1x16x64xf32>
    %2 = vector.shape_cast %1 : vector<1x16x64xf32> to vector<16x64xf32>
    %cst = arith.constant dense<0.000000e+00> : vector<8x64xf32>
    %3 = tpu.matmul %0, %2, %cst {dimension_numbers = #tpu.dot_dimension_numbers<[1], [0], [0], [1], [0, 0, 1, 1], [], []>} : vector<8x16xf32>, vector<16x64xf32>, vector<8x64xf32> -> vector<8x64xf32>
    %c0_4 = arith.constant 0 : index
    %c0_5 = arith.constant 0 : index
    %4 = vector.load %arg4[%c0_4, %c0_5] : memref<8x1xf32, #tpu.memory_space<vmem>>, vector<8x1xf32>
    %5 = vector.broadcast %4 : vector<8x1xf32> to vector<8x64xf32>
    %6 = arith.addf %3, %5 : vector<8x64xf32>
    %c0_6 = arith.constant 0 : index
    %c0_7 = arith.constant 0 : index
    %7 = memref.load %arg5[%c0_6, %c0_7] : memref<1x1xf32, #tpu.memory_space<smem>>
    %cst_8 = arith.constant 0.000000e+00 : f32
    %8 = vector.broadcast %cst_8 : f32 to vector<8x64xf32>
    %9 = arith.cmpf ogt, %6, %8 : vector<8x64xf32>
    %10 = vector.broadcast %7 : f32 to vector<8x64xf32>
    %11 = arith.mulf %10, %6 : vector<8x64xf32>
    %12 = arith.select %9, %6, %11 : vector<8x64xi1>, vector<8x64xf32>
    %c0_9 = arith.constant 0 : index
    %c0_10 = arith.constant 0 : index
    %c0_11 = arith.constant 0 : index
    %13 = vector.load %arg6[%c0_9, %c0_10, %c0_11] : memref<1x8x64xf32, #tpu.memory_space<vmem>>, vector<1x8x64xf32>
    %14 = vector.shape_cast %13 : vector<1x8x64xf32> to vector<8x64xf32>
    %15 = vector.shape_cast %12 : vector<8x64xf32> to vector<1x8x64xf32>
    tpu.vector_store %arg6[%c0_9, %c0_10, %c0_11], %15 {strides = array<i32>} : memref<1x8x64xf32, #tpu.memory_space<vmem>>, vector<1x8x64xf32>,
    return
  }
  func.func @transform_0(%arg0: i32, %arg1: i32) -> (i32, i32, i32) {
    %c0_i32 = arith.constant 0 : i32
    %c0_i32_0 = arith.constant 0 : i32
    return %arg0, %c0_i32, %arg1 : i32, i32, i32
  }
  func.func @transform_1(%arg0: i32, %arg1: i32) -> (i32, i32) {
    %c0_i32 = arith.constant 0 : i32
    %c0_i32_0 = arith.constant 0 : i32
    %c0_i32_1 = arith.constant 0 : i32
    return %c0_i32, %c0_i32_0 : i32, i32
  }
  func.func @transform_2(%arg0: i32, %arg1: i32) -> (i32, i32) {
    %c0_i32 = arith.constant 0 : i32
    %c0_i32_0 = arith.constant 0 : i32
    %c0_i32_1 = arith.constant 0 : i32
    return %c0_i32, %c0_i32_0 : i32, i32
  }
  func.func @transform_3(%arg0: i32, %arg1: i32) -> (i32, i32) {
    %c0_i32 = arith.constant 0 : i32
    %c0_i32_0 = arith.constant 0 : i32
    %c0_i32_1 = arith.constant 0 : i32
    return %c0_i32, %c0_i32_0 : i32, i32
  }
  func.func @transform_4(%arg0: i32, %arg1: i32) -> (i32, i32, i32) {
    %c0_i32 = arith.constant 0 : i32
    %c0_i32_0 = arith.constant 0 : i32
    return %arg0, %c0_i32, %arg1 : i32, i32, i32
  }
}

</mosaic_0001>

<llo_original>
// kernel: patch_merging_forward.1
$region0: #{patch_merging_forward.1}
  #allocation0 [shape = 'u32[]', space=smem, size = 0x4, offset = 0x4, fixed_abs, tag = 'smem constant byte address 0x4 - core index']
  #allocation1 [shape = 'u32[144,128]{1,0:T(1,128)}', space=vmem, size = 0x12000, scoped, tag = 'internal scratch']
  #allocation2 [shape = 'f32[1,1]{1,0:T(1,128)S(6)}', space=smem, size = 0x200, scoped, tag = 'scoped memory for patch_merging_forward.1']
  %s0 = inlined_call_operand.vmem [shape: f32[2,16,64], index: 0, kind: input, shape index: {}]
  %s1 = inlined_call_operand.vmem [shape: f32[8,16], index: 1, kind: input, shape index: {}]
  %s2 = inlined_call_operand.vmem [shape: f32[8,1], index: 2, kind: input, shape index: {}]
  %s3 = inlined_call_operand.<no memory space> [shape: f32[1,1], index: 3, kind: input, shape index: {}]
  %s4 = inlined_call_operand.vmem [shape: f32[2,8,64], index: 4, kind: output, shape index: {}]
  %s5 = sld [smem:[#allocation0]]
  $region49: #{patch_merging_forward.1} parent=0
    _
  %s7 = ssub.s32 1, %s5
  %s8 = scalar_select 0, %s7, %s5
  %9 = sst [smem:[#allocation2]] %s3
  loop: start=0, step=1, limit=4
  $region2: #{patch_merging_forward.1} parent=0 // loop_pre_header
    _
  $region3: #{patch_merging_forward.1} parent=0 // loop_header
    %s11 = sphi 0, %s15
    %p12 = scmp.ge.s32.totalorder %s11, 4
    %s18 = sphi 0, %s30
    %s19 = sphi 0, %s26
    %s20 = sphi 0, %s18
    %s21 = sphi 0, %s19
    %s22 = sphi 0, %s20
    %s23 = sphi 0, %s21
    %s35 = sphi 0, %s37
    %s38 = sphi 0, %s35
    %s39 = sphi 0, %s38
    %s55 = sphi 0, %s39
    %s59 = sphi 0, %s59
    %s61 = sphi 0, %s59
    %s62 = sphi 0, %s61
    %s76 = sphi 0, %s62
    %s80 = sphi 0, %s80
    %s82 = sphi 0, %s80
    %s83 = sphi 0, %s82
    %s97 = sphi 0, %s83
    %s101 = sphi 0, %s101
    %s103 = sphi 0, %s101
    %s104 = sphi 0, %s103
    %s118 = sphi 0, %s104
    %s126 = sphi 0, %s128
    %s129 = sphi 0, %s126
    %s130 = sphi 0, %s129
    %s146 = sphi 0, %s130
  $region4: #{patch_merging_forward.1} parent=0 // loop_header_branch
    %14 = sbr.rel (%p12) target = $region8
  $region5: #{patch_merging_forward.1} parent=0 // loop_body
    %s16 = ssub.s32 %s11, 1
    %s17 = ssub.s32 %s11, 2
    %s24 = sadd.s32 1, %s19
    %p25 = scmp.ge.s32.totalorder %s24, 1
    %s26 = scalar_select %p25, 0, %s24
    %s27 = sadd.s32 1, %s18
    %s28 = scalar_select %p25, %s27, %s18
    %p29 = scmp.ge.s32.totalorder %s28, 2
    %s30 = scalar_select %p29, 0, %s28
    %s31 = ssub.s32 %s18, %s30
    %s32 = ssub.s32 %s19, %s26
    %s33 = sor.u32 %s31, %s32
    %p34 = scmp.eq.s32.totalorder %s33, 0
    %s36 = sadd.s32 %s35, 1
    %s37 = scalar_select %p34, %s35, %s36
    %p40 = pneg %p34
    %p41 = scmp.eq.s32.totalorder %s11, 1
    %p42 = por %p40, %p41
    %p43 = scmp.ne.s32.totalorder %s35, %s38
    %p44 = scmp.eq.s32.totalorder %s11, 0
    %p45 = por %p43, %p44
    %p46 = scmp.ne.s32.totalorder %s35, %s38
    %p47 = scmp.eq.s32.totalorder %s16, 1
    %p48 = por %p46, %p47
    %p49 = scmp.ne.s32.totalorder %s38, %s39
    %p50 = scmp.eq.s32.totalorder %s16, 0
    %p51 = por %p49, %p50
    %p52 = scmp.ne.s32.totalorder %s38, %s39
    %p53 = scmp.eq.s32.totalorder %s17, 1
    %p54 = por %p52, %p53
    %p56 = scmp.ne.s32.totalorder %s39, %s55
    %p57 = scmp.eq.s32.totalorder %s17, 0
    %p58 = por %p56, %p57
    %s60 = sadd.s32 %s59, 1
    %p63 = scmp.eq.s32.totalorder %s11, 1
    %p64 = scmp.ne.s32.totalorder %s59, %s61
    %p65 = scmp.eq.s32.totalorder %s11, 0
    %p66 = por %p64, %p65
    %p67 = scmp.ne.s32.totalorder %s59, %s61
    %p68 = scmp.eq.s32.totalorder %s16, 1
    %p69 = por %p67, %p68
    %p70 = scmp.ne.s32.totalorder %s61, %s62
    %p71 = scmp.eq.s32.totalorder %s16, 0
    %p72 = por %p70, %p71
    %p73 = scmp.ne.s32.totalorder %s61, %s62
    %p74 = scmp.eq.s32.totalorder %s17, 1
    %p75 = por %p73, %p74
    %p77 = scmp.ne.s32.totalorder %s62, %s76
    %p78 = scmp.eq.s32.totalorder %s17, 0
    %p79 = por %p77, %p78
    %s81 = sadd.s32 %s80, 1
    %p84 = scmp.eq.s32.totalorder %s11, 1
    %p85 = scmp.ne.s32.totalorder %s80, %s82
    %p86 = scmp.eq.s32.totalorder %s11, 0
    %p87 = por %p85, %p86
    %p88 = scmp.ne.s32.totalorder %s80, %s82
    %p89 = scmp.eq.s32.totalorder %s16, 1
    %p90 = por %p88, %p89
    %p91 = scmp.ne.s32.totalorder %s82, %s83
    %p92 = scmp.eq.s32.totalorder %s16, 0
    %p93 = por %p91, %p92
    %p94 = scmp.ne.s32.totalorder %s82, %s83
    %p95 = scmp.eq.s32.totalorder %s17, 1
    %p96 = por %p94, %p95
    %p98 = scmp.ne.s32.totalorder %s83, %s97
    %p99 = scmp.eq.s32.totalorder %s17, 0
    %p100 = por %p98, %p99
    %s102 = sadd.s32 %s101, 1
    %p105 = scmp.eq.s32.totalorder %s11, 1
    %p106 = scmp.ne.s32.totalorder %s101, %s103
    %p107 = scmp.eq.s32.totalorder %s11, 0
    %p108 = por %p106, %p107
    %p109 = scmp.ne.s32.totalorder %s101, %s103
    %p110 = scmp.eq.s32.totalorder %s16, 1
    %p111 = por %p109, %p110
    %p112 = scmp.ne.s32.totalorder %s103, %s104
    %p113 = scmp.eq.s32.totalorder %s16, 0
    %p114 = por %p112, %p113
    %p115 = scmp.ne.s32.totalorder %s103, %s104
    %p116 = scmp.eq.s32.totalorder %s17, 1
    %p117 = por %p115, %p116
    %p119 = scmp.ne.s32.totalorder %s104, %s118
    %p120 = scmp.eq.s32.totalorder %s17, 0
    %p121 = por %p119, %p120
    %s122 = ssub.s32 %s18, %s30
    %s123 = ssub.s32 %s19, %s26
    %s124 = sor.u32 %s122, %s123
    %p125 = scmp.eq.s32.totalorder %s124, 0
    %s127 = sadd.s32 %s126, 1
    %s128 = scalar_select %p125, %s126, %s127
    %p131 = pneg %p125
    %p132 = scmp.eq.s32.totalorder %s11, 1
    %p133 = por %p131, %p132
    %p134 = scmp.ne.s32.totalorder %s126, %s129
    %p135 = scmp.eq.s32.totalorder %s11, 0
    %p136 = por %p134, %p135
    %p137 = scmp.ne.s32.totalorder %s126, %s129
    %p138 = scmp.eq.s32.totalorder %s16, 1
    %p139 = por %p137, %p138
    %p140 = scmp.ne.s32.totalorder %s129, %s130
    %p141 = scmp.eq.s32.totalorder %s16, 0
    %p142 = por %p140, %p141
    %p143 = scmp.ne.s32.totalorder %s129, %s130
    %p144 = scmp.eq.s32.totalorder %s17, 1
    %p145 = por %p143, %p144
    %p147 = scmp.ne.s32.totalorder %s130, %s146
    %p148 = scmp.eq.s32.totalorder %s17, 0
    %p149 = por %p147, %p148
    %p150 = scmp.le.s32.totalorder 1, %s11
    %p151 = scmp.lt.s32.totalorder %s11, 3
    %p152 = pnand %p150, %p151
    %p153 = pneg %p152
    // Predicated region
    $region9: #{patch_merging_forward.1} parent=5 // pred_check
      _
    $region10: #{patch_merging_forward.1} parent=5 // pred_check_branch
      %155 = sbr.rel (%p152) target = $region12
    $region11: #{patch_merging_forward.1} parent=5 // pred_region
      %s156 = ssub.s32 %s11, 1
      // Predicated region
      $region13: #{patch_merging_forward.1} parent=11 // pred_check
        %p157 = pneg %p72
      $region14: #{patch_merging_forward.1} parent=11 // pred_check_branch
        %159 = sbr.rel (%p157) target = $region16
      $region15: #{patch_merging_forward.1} parent=11 // pred_region
        _
      $region16: #{patch_merging_forward.1} parent=11 // pred_fallthru
        _
      // Predicated region
      $region17: #{patch_merging_forward.1} parent=11 // pred_check
        %p160 = pneg %p93
      $region18: #{patch_merging_forward.1} parent=11 // pred_check_branch
        %162 = sbr.rel (%p160) target = $region20
      $region19: #{patch_merging_forward.1} parent=11 // pred_region
        _
      $region20: #{patch_merging_forward.1} parent=11 // pred_fallthru
        _
      // Predicated region
      $region21: #{patch_merging_forward.1} parent=11 // pred_check
        %p163 = pneg %p114
      $region22: #{patch_merging_forward.1} parent=11 // pred_check_branch
        %165 = sbr.rel (%p163) target = $region24
      $region23: #{patch_merging_forward.1} parent=11 // pred_region
        _
      $region24: #{patch_merging_forward.1} parent=11 // pred_fallthru
        _
    $region12: #{patch_merging_forward.1} parent=5 // pred_fallthru
      _
    %p166 = scmp.lt.s32.totalorder %s11, 2
    // Predicated region
    $region25: #{patch_merging_forward.1} parent=5 // pred_check
      %p167 = pneg %p166
    $region26: #{patch_merging_forward.1} parent=5 // pred_check_branch
      %169 = sbr.rel (%p167) target = $region28
    $region27: #{patch_merging_forward.1} parent=5 // pred_region
      // Predicated region
      $region29: #{patch_merging_forward.1} parent=27 // pred_check
        %p170 = pneg %p45
      $region30: #{patch_merging_forward.1} parent=27 // pred_check_branch
        %172 = sbr.rel (%p170) target = $region32
      $region31: #{patch_merging_forward.1} parent=27 // pred_region
        %p173 = scmp.lt.s32.totalorder %s18, 1
        %s174 = scalar_select %p173, %s18, 1
        %p175 = scmp.lt.s32.totalorder %s19, 0
        %s176 = scalar_select %p175, %s19, 0
        %s177 = smul.addr %s174, 2
        %s178 = sadd.s32 %s176, %s177
        %s179 = smul.addr %s178, 8
        %s180 = scalar_lea.vmem %s0, %s179
      $region32: #{patch_merging_forward.1} parent=27 // pred_fallthru
        _
    $region28: #{patch_merging_forward.1} parent=5 // pred_fallthru
      _
    %p181 = scmp.le.s32.totalorder 1, %s11
    %p182 = scmp.lt.s32.totalorder %s11, 3
    %p183 = pnand %p181, %p182
    %p184 = pneg %p183
    // Predicated region
    $region33: #{patch_merging_forward.1} parent=5 // pred_check
      _
    $region34: #{patch_merging_forward.1} parent=5 // pred_check_branch
      %186 = sbr.rel (%p183) target = $region36
    $region35: #{patch_merging_forward.1} parent=5 // pred_region
      %s187 = ssub.s32 %s11, 1
      %p188 = scmp.lt.s32.totalorder %s20, 1
      %s189 = scalar_select %p188, %s20, 1
      %p190 = scmp.lt.s32.totalorder %s21, 0
      %s191 = scalar_select %p190, %s21, 0
      %s192 = smul.addr %s189, 2
      %s193 = sadd.s32 %s191, %s192
      %s194 = smul.addr %s193, 8
      %s195 = scalar_lea.vmem %s0, %s194
      %p196 = pneg %p51
      %p197 = pneg %p48
      %p198 = pneg %p72
      %p199 = pneg %p69
      %p200 = pneg %p93
      %p201 = pneg %p90
      %p202 = pneg %p114
      %p203 = pneg %p111
      %p204 = pneg %p142
      %p205 = pneg %p139
      %p206 = scmp.lt.s32.totalorder %s20, 1
      %s207 = scalar_select %p206, %s20, 1
      %p208 = scmp.lt.s32.totalorder %s21, 0
      %s209 = scalar_select %p208, %s21, 0
      %s210 = sadd.s32 %s209, %s207
      %s211 = smul.addr %s210, 8
      %s212 = scalar_lea.vmem %s4, %s211
      %p213 = scmp.lt.s32.totalorder %s20, 1
      %s214 = scalar_select %p213, %s20, 1
      %p215 = scmp.lt.s32.totalorder %s21, 0
      %s216 = scalar_select %p215, %s21, 0
      %s217 = smul.addr %s214, 2
      %s218 = sadd.s32 %s216, %s217
      %s219 = smul.addr %s218, 8
      %s220 = scalar_lea.vmem %s0, %s219
      %p221 = scmp.lt.s32.totalorder %s20, 1
      %s222 = scalar_select %p221, %s20, 1
      %p223 = scmp.lt.s32.totalorder %s21, 0
      %s224 = scalar_select %p223, %s21, 0
      %s225 = sadd.s32 %s224, %s222
      %s226 = smul.addr %s225, 8
      %s227 = scalar_lea.vmem %s4, %s226
      %v228 = vld [vmem:[%s1] sm:$0xff]
      %v229 = vld [vmem:[%s220] sm:$0xff]
      %v230 = vld [vmem:[%s220 + $0x8] sm:$0xff]
      %v231 = vld [vmem:[%s2] sm:$0xff]
      %233 = vset.pattern.permute.xlu0 0
      %234 = vperm.xlu0 %233, %v231
      %v235 = vpop.permute.xlu0 %234
      %vm237 = vcmask 130048
      %v239 = vsel %vm237, %v228, 0
      %241 = vmatprep.subr.mxu0 0.0
      %242 = vmatpush1.msra.mxu0 0.0
      %243 = vmatprep.subr.mxu0 0.0
      %244 = vmatpush1.msra.mxu0 0.0
      %245 = vmatprep.subr.mxu0 0.0
      %246 = vmatpush1.msra.mxu0 0.0
      %247 = vmatprep.subr.mxu0 0.0
      %248 = vmatpush1.msra.mxu0 0.0
      %249 = vmatprep.subr.mxu0 0.0
      %250 = vmatpush1.msra.mxu0 0.0
      %251 = vmatprep.subr.mxu0 0.0
      %252 = vmatpush1.msra.mxu0 0.0
      %253 = vmatprep.subr.mxu0 0.0
      %254 = vmatpush1.msra.mxu0 0.0
      %255 = vmatprep.subr.mxu0 0.0
      %256 = vmatpush1.msra.mxu0 0.0
      %257 = vmatprep.subr.mxu0 0.0
      %258 = vmatpush1.msra.mxu0 0.0
      %259 = vmatprep.subr.mxu0 0.0
      %260 = vmatpush1.msra.mxu0 0.0
      %261 = vmatprep.subr.mxu0 0.0
      %262 = vmatpush1.msra.mxu0 0.0
      %263 = vmatprep.subr.mxu0 0.0
      %264 = vmatpush1.msra.mxu0 0.0
      %265 = vmatprep.subr.mxu0 0.0
      %266 = vmatpush1.msra.mxu0 0.0
      %267 = vmatprep.subr.mxu0 0.0
      %268 = vmatpush1.msra.mxu0 0.0
      %269 = vmatprep.subr.mxu0 0.0
      %270 = vmatpush1.msra.mxu0 %v230
      %271 = vmatprep.subr.mxu0 0.0
      %272 = vmatpush1.msra.mxu0 %v229
      %273 = vmatprep.subr.mxu0 0.0
      %274 = vmatpush2.msra.mxu0 0.0
      %275 = vmatprep.subr.mxu0 0.0
      %276 = vmatpush2.msra.mxu0 0.0
      %277 = vmatprep.subr.mxu0 0.0
      %278 = vmatpush2.msra.mxu0 0.0
      %279 = vmatprep.subr.mxu0 0.0
      %280 = vmatpush2.msra.mxu0 0.0
      %281 = vmatprep.subr.mxu0 0.0
      %282 = vmatpush2.msra.mxu0 0.0
      %283 = vmatprep.subr.mxu0 0.0
      %284 = vmatpush2.msra.mxu0 0.0
      %285 = vmatprep.subr.mxu0 0.0
      %286 = vmatpush2.msra.mxu0 0.0
      %287 = vmatprep.subr.mxu0 0.0
      %288 = vmatpush2.msra.mxu0 0.0
      %289 = vmatprep.subr.mxu0 0.0
      %290 = vmatpush2.msra.mxu0 0.0
      %291 = vmatprep.subr.mxu0 0.0
      %292 = vmatpush2.msra.mxu0 0.0
      %293 = vmatprep.subr.mxu0 0.0
      %294 = vmatpush2.msra.mxu0 0.0
      %295 = vmatprep.subr.mxu0 0.0
      %296 = vmatpush2.msra.mxu0 0.0
      %297 = vmatprep.subr.mxu0 0.0
      %298 = vmatpush2.msra.mxu0 0.0
      %299 = vmatprep.subr.mxu0 0.0
      %300 = vmatpush2.msra.mxu0 0.0
      %301 = vmatprep.subr.mxu0 0.0
      %302 = vmatpush2.msra.mxu0 0.0
      %303 = vmatprep.subr.mxu0 0.0
      %304 = vmatpush2.msra.mxu0 0.0
      %305 = vmatprep.mubr.f32.mxu0 0.0
      %306 = vmatmul.mubr.f32.gmra.mxu0 %v239
      %v307 = vpop.f32.mrf.mxu0
      %v308 = vadd.f32 %v235, %v307
      %v309 = vpop.f32.mrf.mxu0
      %310 = vdwg.mxu0
      %s311 = sld [smem:[#allocation2]]
      %vm312 = vcmp.gt.f32.partialorder %v308, 0.0
      %v313 = vstv %s311
      %v314 = vmul.f32 %v313, %v308
      %v315 = vsel %vm312, %v308, %v314
      %vm316 = vcmask 523264
      %317 = vst.msk [vmem:[%s227] sm:$0xff] %vm316, %v315
      %p318 = scmp.lt.s32.totalorder %s20, 1
      %s319 = scalar_select %p318, %s20, 1
      %p320 = scmp.lt.s32.totalorder %s21, 0
      %s321 = scalar_select %p320, %s21, 0
      %s322 = sadd.s32 %s321, %s319
      %s323 = smul.addr %s322, 8
      %s324 = scalar_lea.vmem %s4, %s323
      // Predicated region
      $region37: #{patch_merging_forward.1} parent=35 // pred_check
        %p325 = pneg %p139
      $region38: #{patch_merging_forward.1} parent=35 // pred_check_branch
        %327 = sbr.rel (%p325) target = $region40
      $region39: #{patch_merging_forward.1} parent=35 // pred_region
        _
      $region40: #{patch_merging_forward.1} parent=35 // pred_fallthru
        _
    $region36: #{patch_merging_forward.1} parent=5 // pred_fallthru
      _
    %p328 = scmp.le.s32.totalorder 2, %s11
    // Predicated region
    $region41: #{patch_merging_forward.1} parent=5 // pred_check
      %p329 = pneg %p328
    $region42: #{patch_merging_forward.1} parent=5 // pred_check_branch
      %331 = sbr.rel (%p329) target = $region44
    $region43: #{patch_merging_forward.1} parent=5 // pred_region
      %s332 = ssub.s32 %s11, 2
      // Predicated region
      $region45: #{patch_merging_forward.1} parent=43 // pred_check
        %p333 = pneg %p145
      $region46: #{patch_merging_forward.1} parent=43 // pred_check_branch
        %335 = sbr.rel (%p333) target = $region48
      $region47: #{patch_merging_forward.1} parent=43 // pred_region
        %p336 = scmp.lt.s32.totalorder %s22, 1
        %s337 = scalar_select %p336, %s22, 1
        %p338 = scmp.lt.s32.totalorder %s23, 0
        %s339 = scalar_select %p338, %s23, 0
        %s340 = sadd.s32 %s339, %s337
        %s341 = smul.addr %s340, 8
        %s342 = scalar_lea.vmem %s4, %s341
      $region48: #{patch_merging_forward.1} parent=43 // pred_fallthru
        _
    $region44: #{patch_merging_forward.1} parent=5 // pred_fallthru
      _
  $region6: #{patch_merging_forward.1} parent=0 // loop_footer
    %s15 = sadd.s32 1, %s11
  $region7: #{patch_merging_forward.1} parent=0 // loop_footer_branch
    %10 = sbr.rel target = $region3
  $region8: #{patch_merging_forward.1} parent=0 // loop_exit
    _

</llo_original>
